<compile_context>
chip_gen: v7x
topology: tpu7x:2x2x1
jax: 0.10.0
libtpu: 0.0.40
codegen_flags: <defaults>
</compile_context>

<pallas_src>
import jax
import jax.numpy as jnp
import numpy as np
from jax.experimental import pallas as pl
from jax.experimental.pallas import tpu as pltpu


_TARGET_OUT_BLOCK_BYTES = 8 * 1024 * 1024   # aim: one output buffer of several MiB
_VMEM_FOOTPRINT_CAP = 40 * 1024 * 1024      # double-buffered total; v7x (64 MiB) safe
_VMEM_LIMIT_BYTES = 48 * 1024 * 1024        # > 16/32 MiB scoped defaults, < 64 MiB (v7x)


def _round_up(n, m):
    return ((n + m - 1) // m) * m


def _footprint_bytes(tb, te, L, itemsize=4):
    """Double-buffered VMEM footprint of all blocks (out + x + w)."""
    L_sub = _round_up(L, 8)
    te_lane = _round_up(te, 128)
    out_blk = tb * L_sub * te_lane * itemsize
    x_blk = _round_up(tb, 8) * _round_up(L, 128) * itemsize
    w_blk = L_sub * te_lane * itemsize
    return 2 * (out_blk + x_blk + w_blk)


def _select_tiles(B, L, E):
    """Pick (tb, te): big, lane-dense blocks for a writeback-bound op, within a
    VMEM budget that is safe on every generation (incl. v7x's 64 MiB)."""
    L_sub = _round_up(L, 8)

    # Lane (E) tile: full E when small or 128-aligned, else the largest
    # multiple of 128 <= E (only the last E-tile gets masked stores).
    if E <= 128 or E % 128 == 0:
        te = E
    else:
        te = (E // 128) * 128
    # Don't let a single (L, te) output row-slab alone exceed the per-buffer target.
    max_te = max(128, (_TARGET_OUT_BLOCK_BYTES // (L_sub * 4)) // 128 * 128)
    te = min(te, max_te)

    # Batch tile: as many rows as fit the per-buffer target; multiple of 8 (or
    # the full batch) so the 2-D x block satisfies the (8,128) rule.
    te_lane = _round_up(te, 128)
    tb = max(1, _TARGET_OUT_BLOCK_BYTES // (L_sub * te_lane * 4))
    if tb >= B:
        tb = B
    else:
        tb = max(8, (tb // 8) * 8)
        tb = min(tb, B)

    # Enforce the total double-buffered footprint cap.
    while _footprint_bytes(tb, te, L) > _VMEM_FOOTPRINT_CAP and tb > 8 and tb != B:
        tb = max(8, ((tb // 2) // 8) * 8)
    while _footprint_bytes(tb, te, L) > _VMEM_FOOTPRINT_CAP and te > 128:
        te = max(128, ((te // 2) // 128) * 128)

    # If the whole problem collapsed into one block, split an axis in two so
    # v7x's 2 TensorCores both get work (harmless on single-core gens).
    if pl.cdiv(E, te) * pl.cdiv(B, tb) == 1:
        if te >= 256 and te % 256 == 0:
            te //= 2
        elif B >= 16 and B % 16 == 0:
            tb = B // 2

    return tb, te


def _chem_embed_kernel(x_ref, w_ref, o_ref):
    # x_ref: (TB, L)      one scalar per (batch row, element); lane-broadcast here
    # w_ref: (L, TE)      embedding-table column tile (resident across batch axis)
    # o_ref: (TB, L, TE)
    x = x_ref[...]
    w = w_ref[...]
    o_ref[...] = (x[:, :, None] * w[None, :, :]).astype(o_ref.dtype)


def chemical_embedding_forward(x, weight, *, tb=None, te=None, out_dtype=jnp.float32):
    """x: (B, L), weight: (L, E) -> (B, 1, L*E) with out[b,0,i*E+j] = x[b,i]*weight[i,j]."""
    B, L = x.shape
    L_w, E = weight.shape
    assert L == L_w, (L, L_w)

    auto_tb, auto_te = _select_tiles(B, L, E)
    if tb is None:
        tb = auto_tb
    if te is None:
        te = auto_te

    x2 = x.astype(jnp.float32)     # 2-D: no wasted lane padding in VMEM
    w = weight.astype(jnp.float32)  # (L, E), used directly -- no `trans`, no matmul

    grid = (pl.cdiv(E, te), pl.cdiv(B, tb))  # batch innermost -> weight tile stays resident

    out3 = pl.pallas_call(
        _chem_embed_kernel,
        out_shape=jax.ShapeDtypeStruct((B, L, E), out_dtype),
        grid_spec=pl.GridSpec(
            grid=grid,
            in_specs=[
                # x block: changes only with the (inner) batch step.
                pl.BlockSpec((tb, L), lambda e, b: (b, 0)),
                # weight block: index_map ignores b -> stays in VMEM across the
                # whole inner batch loop (no re-DMA).
                pl.BlockSpec((L, te), lambda e, b: (0, e)),
            ],
            out_specs=pl.BlockSpec((tb, L, te), lambda e, b: (b, 0, e)),
        ),
        compiler_params=pltpu.CompilerParams(
            dimension_semantics=("parallel", "parallel"),
            vmem_limit_bytes=_VMEM_LIMIT_BYTES,
        ),
    )(x2, w)

    return out3.reshape(B, 1, L * E)


if __name__ == "__main__":
    # Small shapes consistent with the module: length (number of chemical
    # elements) L = 8, embedding_size E = 256, batch B = 16.  Auto tiling picks
    # te=128 here so the grid is (2, 1): two lane-dense blocks that v7x can
    # shard across its 2 TensorCores.
    B, L, E = 16, 8, 256

    key = jax.random.PRNGKey(0)
    k_x, k_w, k_x2, k_w2 = jax.random.split(key, 4)
    x = jax.random.normal(k_x, (B, L), dtype=jnp.float32)
    # Deterministic synthetic "nn.Embedding" weight (N(0,1) like torch default).
    weight = jax.random.normal(k_w, (L, E), dtype=jnp.float32)

    out = chemical_embedding_forward(x, weight)
    out = jax.block_until_ready(out)

    # Reference: result[b, 0, i*E + j] = x[b, i] * weight[i, j]
    ref = (np.asarray(x)[:, :, None] * np.asarray(weight)[None, :, :]).reshape(B, 1, L * E)
    assert out.shape == (B, 1, L * E), out.shape
    np.testing.assert_allclose(np.asarray(out), ref, rtol=1e-6, atol=1e-6)

    # Also exercise the non-128-aligned E path (last lane tile uses masked stores).
    B2, L2, E2 = 4, 8, 200
    x_b = jax.random.normal(k_x2, (B2, L2), dtype=jnp.float32)
    w_b = jax.random.normal(k_w2, (L2, E2), dtype=jnp.float32)
    out_b = jax.block_until_ready(chemical_embedding_forward(x_b, w_b))
    ref_b = (np.asarray(x_b)[:, :, None] * np.asarray(w_b)[None, :, :]).reshape(B2, 1, L2 * E2)
    np.testing.assert_allclose(np.asarray(out_b), ref_b, rtol=1e-6, atol=1e-6)

    print("KERNEL_OK")
</pallas_src>

<mosaic_0001>
module attributes {stable_mosaic.version = 11 : i64} {
  func.func @_chem_embed_kernel(%arg0: i32, %arg1: i32, %arg2: memref<16x8xf32, #tpu.memory_space<vmem>>, %arg3: memref<8x128xf32, #tpu.memory_space<vmem>>, %arg4: memref<16x8x128xf32, #tpu.memory_space<vmem>>) attributes {dimension_semantics = [#tpu.dimension_semantics<parallel>, #tpu.dimension_semantics<parallel>], iteration_bounds = array<i64: 2, 1>, scalar_prefetch = 0 : i64, scratch_operands = 0 : i64, tpu.core_type = #tpu.core_type<tc>, window_params = [{transform_indices = @transform_0, window_bounds = array<i64: 16, 8>}, {transform_indices = @transform_1, window_bounds = array<i64: 8, 128>}, {transform_indices = @transform_2, window_bounds = array<i64: 16, 8, 128>}]} {
    %c0 = arith.constant 0 : index
    %c0_0 = arith.constant 0 : index
    %0 = vector.load %arg2[%c0, %c0_0] : memref<16x8xf32, #tpu.memory_space<vmem>>, vector<16x8xf32>
    %c0_1 = arith.constant 0 : index
    %c0_2 = arith.constant 0 : index
    %1 = vector.load %arg3[%c0_1, %c0_2] : memref<8x128xf32, #tpu.memory_space<vmem>>, vector<8x128xf32>
    %2 = vector.shape_cast %0 : vector<16x8xf32> to vector<16x8x1xf32>
    %3 = vector.shape_cast %1 : vector<8x128xf32> to vector<1x8x128xf32>
    %4 = vector.broadcast %2 : vector<16x8x1xf32> to vector<16x8x128xf32>
    %5 = vector.broadcast %3 : vector<1x8x128xf32> to vector<16x8x128xf32>
    %6 = arith.mulf %4, %5 : vector<16x8x128xf32>
    %c0_3 = arith.constant 0 : index
    %c0_4 = arith.constant 0 : index
    %c0_5 = arith.constant 0 : index
    %7 = vector.load %arg4[%c0_3, %c0_4, %c0_5] : memref<16x8x128xf32, #tpu.memory_space<vmem>>, vector<16x8x128xf32>
    tpu.vector_store %arg4[%c0_3, %c0_4, %c0_5], %6 {strides = array<i32>} : memref<16x8x128xf32, #tpu.memory_space<vmem>>, vector<16x8x128xf32>,
    return
  }
  func.func @transform_0(%arg0: i32, %arg1: i32) -> (i32, i32) {
    %c0_i32 = arith.constant 0 : i32
    %c0_i32_0 = arith.constant 0 : i32
    return %arg1, %c0_i32 : i32, i32
  }
  func.func @transform_1(%arg0: i32, %arg1: i32) -> (i32, i32) {
    %c0_i32 = arith.constant 0 : i32
    %c0_i32_0 = arith.constant 0 : i32
    return %c0_i32, %arg0 : i32, i32
  }
  func.func @transform_2(%arg0: i32, %arg1: i32) -> (i32, i32, i32) {
    %c0_i32 = arith.constant 0 : i32
    %c0_i32_0 = arith.constant 0 : i32
    return %arg1, %c0_i32, %arg0 : i32, i32, i32
  }
}

</mosaic_0001>

<llo_original>
// kernel: tpu_custom_call.1
$region0: #{tpu_custom_call.1}
  #allocation0 [shape = 'u32[]', space=smem, size = 0x4, offset = 0x4, fixed_abs, tag = 'smem constant byte address 0x4 - core index']
  #allocation1 [shape = 'u32[144,128]{1,0:T(1,128)}', space=vmem, size = 0x12000, scoped, tag = 'internal scratch']
  %s0 = inlined_call_operand.vmem [shape: f32[16,8], index: 0, kind: input, shape index: {}]
  %s1 = inlined_call_operand.vmem [shape: f32[8,256], index: 1, kind: input, shape index: {}]
  %s2 = inlined_call_operand.hbm [shape: f32[16,8,256], index: 2, kind: output, shape index: {}]
  %s3 = sld [smem:[#allocation0]]
  $region41: #{tpu_custom_call.1} parent=0
    _
  %s5 = ssub.s32 1, %s3
  %s6 = scalar_select 0, %s5, %s3
  $region1: #{tpu_custom_call.1} parent=0
    #allocation2 [shape = 'u8[131072]{0}', space=vmem, size = 0x20000, scoped, tag = 'output window, operand 0']
    #allocation3 [shape = 's32[2]{0}', space=sflag, size = 0x8, scoped, tag = 'scoped memory for tpu_custom_call.1']
    %7 = vsyncpa [#allocation3], 0
    %s8 = scalar_lea.sflag [#allocation3], 1
    %9 = vsyncpa %s8, 0
    loop: start=0, step=1, limit=4
    $region2: #{tpu_custom_call.1} parent=1 // loop_pre_header
      _
    $region3: #{tpu_custom_call.1} parent=1 // loop_header
      %s11 = sphi 0, %s15
      %p12 = scmp.ge.s32.totalorder %s11, 4
      %s18 = sphi 0, %s30
      %s19 = sphi 0, %s26
      %s20 = sphi 0, %s18
      %s21 = sphi 0, %s19
      %s22 = sphi 0, %s20
      %s23 = sphi 0, %s21
      %s33 = sphi 0, %s35
      %s36 = sphi 0, %s33
      %s37 = sphi 0, %s36
      %s53 = sphi 0, %s37
      %s59 = sphi 0, %s61
      %s62 = sphi 0, %s59
      %s63 = sphi 0, %s62
      %s79 = sphi 0, %s63
      %s87 = sphi 0, %s89
      %s90 = sphi 0, %s87
      %s91 = sphi 0, %s90
      %s107 = sphi 0, %s91
    $region4: #{tpu_custom_call.1} parent=1 // loop_header_branch
      %14 = sbr.rel (%p12) target = $region8
    $region5: #{tpu_custom_call.1} parent=1 // loop_body
      %s16 = ssub.s32 %s11, 1
      %s17 = ssub.s32 %s11, 2
      %s24 = sadd.s32 1, %s19
      %p25 = scmp.ge.s32.totalorder %s24, 1
      %s26 = scalar_select %p25, 0, %s24
      %s27 = sadd.s32 1, %s18
      %s28 = scalar_select %p25, %s27, %s18
      %p29 = scmp.ge.s32.totalorder %s28, 2
      %s30 = scalar_select %p29, 0, %s28
      %s31 = ssub.s32 %s19, %s26
      %p32 = scmp.eq.s32.totalorder %s31, 0
      %s34 = sadd.s32 %s33, 1
      %s35 = scalar_select %p32, %s33, %s34
      %p38 = pneg %p32
      %p39 = scmp.eq.s32.totalorder %s11, 1
      %p40 = por %p38, %p39
      %p41 = scmp.ne.s32.totalorder %s33, %s36
      %p42 = scmp.eq.s32.totalorder %s11, 0
      %p43 = por %p41, %p42
      %p44 = scmp.ne.s32.totalorder %s33, %s36
      %p45 = scmp.eq.s32.totalorder %s16, 1
      %p46 = por %p44, %p45
      %p47 = scmp.ne.s32.totalorder %s36, %s37
      %p48 = scmp.eq.s32.totalorder %s16, 0
      %p49 = por %p47, %p48
      %p50 = scmp.ne.s32.totalorder %s36, %s37
      %p51 = scmp.eq.s32.totalorder %s17, 1
      %p52 = por %p50, %p51
      %p54 = scmp.ne.s32.totalorder %s37, %s53
      %p55 = scmp.eq.s32.totalorder %s17, 0
      %p56 = por %p54, %p55
      %s57 = ssub.s32 %s18, %s30
      %p58 = scmp.eq.s32.totalorder %s57, 0
      %s60 = sadd.s32 %s59, 1
      %s61 = scalar_select %p58, %s59, %s60
      %p64 = pneg %p58
      %p65 = scmp.eq.s32.totalorder %s11, 1
      %p66 = por %p64, %p65
      %p67 = scmp.ne.s32.totalorder %s59, %s62
      %p68 = scmp.eq.s32.totalorder %s11, 0
      %p69 = por %p67, %p68
      %p70 = scmp.ne.s32.totalorder %s59, %s62
      %p71 = scmp.eq.s32.totalorder %s16, 1
      %p72 = por %p70, %p71
      %p73 = scmp.ne.s32.totalorder %s62, %s63
      %p74 = scmp.eq.s32.totalorder %s16, 0
      %p75 = por %p73, %p74
      %p76 = scmp.ne.s32.totalorder %s62, %s63
      %p77 = scmp.eq.s32.totalorder %s17, 1
      %p78 = por %p76, %p77
      %p80 = scmp.ne.s32.totalorder %s63, %s79
      %p81 = scmp.eq.s32.totalorder %s17, 0
      %p82 = por %p80, %p81
      %s83 = ssub.s32 %s19, %s26
      %s84 = ssub.s32 %s18, %s30
      %s85 = sor.u32 %s83, %s84
      %p86 = scmp.eq.s32.totalorder %s85, 0
      %s88 = sadd.s32 %s87, 1
      %s89 = scalar_select %p86, %s87, %s88
      %p92 = pneg %p86
      %p93 = scmp.eq.s32.totalorder %s11, 1
      %p94 = por %p92, %p93
      %p95 = scmp.ne.s32.totalorder %s87, %s90
      %p96 = scmp.eq.s32.totalorder %s11, 0
      %p97 = por %p95, %p96
      %p98 = scmp.ne.s32.totalorder %s87, %s90
      %p99 = scmp.eq.s32.totalorder %s16, 1
      %p100 = por %p98, %p99
      %p101 = scmp.ne.s32.totalorder %s90, %s91
      %p102 = scmp.eq.s32.totalorder %s16, 0
      %p103 = por %p101, %p102
      %p104 = scmp.ne.s32.totalorder %s90, %s91
      %p105 = scmp.eq.s32.totalorder %s17, 1
      %p106 = por %p104, %p105
      %p108 = scmp.ne.s32.totalorder %s91, %s107
      %p109 = scmp.eq.s32.totalorder %s17, 0
      %p110 = por %p108, %p109
      %p111 = scmp.le.s32.totalorder 1, %s11
      %p112 = scmp.lt.s32.totalorder %s11, 3
      %p113 = pnand %p111, %p112
      %p114 = pneg %p113
      // Predicated region
      $region9: #{tpu_custom_call.1} parent=5 // pred_check
        _
      $region10: #{tpu_custom_call.1} parent=5 // pred_check_branch
        %116 = sbr.rel (%p113) target = $region12
      $region11: #{tpu_custom_call.1} parent=5 // pred_region
        %s117 = ssub.s32 %s11, 1
        // Predicated region
        $region13: #{tpu_custom_call.1} parent=11 // pred_check
          %p118 = pneg %p49
        $region14: #{tpu_custom_call.1} parent=11 // pred_check_branch
          %120 = sbr.rel (%p118) target = $region16
        $region15: #{tpu_custom_call.1} parent=11 // pred_region
          %s121 = smul.u32 2, %s21
          %p122 = scmp.lt.s32.totalorder %s121, 1
          %s123 = scalar_select %p122, %s121, 1
          %s124 = smul.addr %s123, 8
          %s125 = scalar_lea.vmem %s0, %s124
          %s126 = smul.u32 2, %s21
        $region16: #{tpu_custom_call.1} parent=11 // pred_fallthru
          _
      $region12: #{tpu_custom_call.1} parent=5 // pred_fallthru
        _
      %p127 = scmp.lt.s32.totalorder %s11, 2
      // Predicated region
      $region17: #{tpu_custom_call.1} parent=5 // pred_check
        %p128 = pneg %p127
      $region18: #{tpu_custom_call.1} parent=5 // pred_check_branch
        %130 = sbr.rel (%p128) target = $region20
      $region19: #{tpu_custom_call.1} parent=5 // pred_region
        // Predicated region
        $region21: #{tpu_custom_call.1} parent=19 // pred_check
          %p131 = pneg %p69
        $region22: #{tpu_custom_call.1} parent=19 // pred_check_branch
          %133 = sbr.rel (%p131) target = $region24
        $region23: #{tpu_custom_call.1} parent=19 // pred_region
          %p134 = scmp.lt.s32.totalorder %s18, 1
          %s135 = scalar_select %p134, %s18, 1
          %s136 = smul.addr %s135, 8
          %s137 = scalar_lea.vmem %s1, %s136
        $region24: #{tpu_custom_call.1} parent=19 // pred_fallthru
          _
      $region20: #{tpu_custom_call.1} parent=5 // pred_fallthru
        _
      %p138 = scmp.le.s32.totalorder 1, %s11
      %p139 = scmp.lt.s32.totalorder %s11, 3
      %p140 = pnand %p138, %p139
      %p141 = pneg %p140
      // Predicated region
      $region25: #{tpu_custom_call.1} parent=5 // pred_check
        _
      $region26: #{tpu_custom_call.1} parent=5 // pred_check_branch
        %143 = sbr.rel (%p140) target = $region28
      $region27: #{tpu_custom_call.1} parent=5 // pred_region
        %s144 = ssub.s32 %s11, 1
        %s145 = smul.u32 2, %s21
        %p146 = scmp.lt.s32.totalorder %s145, 1
        %s147 = scalar_select %p146, %s145, 1
        %s148 = smul.addr %s147, 8
        %s149 = scalar_lea.vmem %s0, %s148
        %p150 = pneg %p49
        %p151 = pneg %p46
        %p152 = scmp.lt.s32.totalorder %s20, 1
        %s153 = scalar_select %p152, %s20, 1
        %s154 = smul.addr %s153, 8
        %s155 = scalar_lea.vmem %s1, %s154
        %p156 = pneg %p75
        %p157 = pneg %p72
        %p158 = pneg %p103
        %p159 = pneg %p100
        %s160 = sand.u32 %s90, 1
        %s161 = scalar_lea.sflag [#allocation3], %s160
        %s162 = sand.u32 %s90, 1
        %s163 = smul.addr %s162, 128
        %s164 = scalar_lea.vmem [#allocation2], %s163
        %s165 = smul.u32 2, %s21
        %p166 = scmp.lt.s32.totalorder %s165, 1
        %s167 = scalar_select %p166, %s165, 1
        %s168 = smul.addr %s167, 8
        %s169 = scalar_lea.vmem %s0, %s168
        %s170 = smul.u32 2, %s21
        %p171 = scmp.lt.s32.totalorder %s20, 1
        %s172 = scalar_select %p171, %s20, 1
        %s173 = smul.addr %s172, 8
        %s174 = scalar_lea.vmem %s1, %s173
        %s175 = smul.u32 16, %s21
        %v176 = vld [vmem:[%s169] sm:$0xff]
        %v177 = vld [vmem:[%s169 + $0x8] sm:$0xff]
        %v178 = vld [vmem:[%s174] sm:$0xff]
        %v179 = vlaneseq
        %v180 = vshrl.u32 %v179, 7
        %v181 = vsub.s32 0, %v180
        %v182 = vrot.slane %v176, %v181
        %184 = vbcast.lane.b32.xlu0 %v182, 256
        %v185 = vpop.permute.xlu0 %184
        %v186 = vlaneseq
        %v187 = vshrl.u32 %v186, 7
        %v188 = vsub.s32 1, %v187
        %v189 = vrot.slane %v176, %v188
        %191 = vbcast.lane.b32.xlu0 %v189, 256
        %v192 = vpop.permute.xlu0 %191
        %v193 = vlaneseq
        %v194 = vshrl.u32 %v193, 7
        %v195 = vsub.s32 2, %v194
        %v196 = vrot.slane %v176, %v195
        %198 = vbcast.lane.b32.xlu0 %v196, 256
        %v199 = vpop.permute.xlu0 %198
        %v200 = vlaneseq
        %v201 = vshrl.u32 %v200, 7
        %v202 = vsub.s32 3, %v201
        %v203 = vrot.slane %v176, %v202
        %205 = vbcast.lane.b32.xlu0 %v203, 256
        %v206 = vpop.permute.xlu0 %205
        %v207 = vlaneseq
        %v208 = vshrl.u32 %v207, 7
        %v209 = vsub.s32 4, %v208
        %v210 = vrot.slane %v176, %v209
        %212 = vbcast.lane.b32.xlu0 %v210, 256
        %v213 = vpop.permute.xlu0 %212
        %v214 = vlaneseq
        %v215 = vshrl.u32 %v214, 7
        %v216 = vsub.s32 5, %v215
        %v217 = vrot.slane %v176, %v216
        %219 = vbcast.lane.b32.xlu0 %v217, 256
        %v220 = vpop.permute.xlu0 %219
        %v221 = vlaneseq
        %v222 = vshrl.u32 %v221, 7
        %v223 = vsub.s32 6, %v222
        %v224 = vrot.slane %v176, %v223
        %226 = vbcast.lane.b32.xlu0 %v224, 256
        %v227 = vpop.permute.xlu0 %226
        %v228 = vlaneseq
        %v229 = vshrl.u32 %v228, 7
        %v230 = vsub.s32 7, %v229
        %v231 = vrot.slane %v176, %v230
        %233 = vbcast.lane.b32.xlu0 %v231, 256
        %v234 = vpop.permute.xlu0 %233
        %v235 = vlaneseq
        %v236 = vshrl.u32 %v235, 7
        %v237 = vsub.s32 0, %v236
        %v238 = vrot.slane %v177, %v237
        %240 = vbcast.lane.b32.xlu0 %v238, 256
        %v241 = vpop.permute.xlu0 %240
        %v242 = vlaneseq
        %v243 = vshrl.u32 %v242, 7
        %v244 = vsub.s32 1, %v243
        %v245 = vrot.slane %v177, %v244
        %247 = vbcast.lane.b32.xlu0 %v245, 256
        %v248 = vpop.permute.xlu0 %247
        %v249 = vlaneseq
        %v250 = vshrl.u32 %v249, 7
        %v251 = vsub.s32 2, %v250
        %v252 = vrot.slane %v177, %v251
        %254 = vbcast.lane.b32.xlu0 %v252, 256
        %v255 = vpop.permute.xlu0 %254
        %v256 = vlaneseq
        %v257 = vshrl.u32 %v256, 7
        %v258 = vsub.s32 3, %v257
        %v259 = vrot.slane %v177, %v258
        %261 = vbcast.lane.b32.xlu0 %v259, 256
        %v262 = vpop.permute.xlu0 %261
        %v263 = vlaneseq
        %v264 = vshrl.u32 %v263, 7
        %v265 = vsub.s32 4, %v264
        %v266 = vrot.slane %v177, %v265
        %268 = vbcast.lane.b32.xlu0 %v266, 256
        %v269 = vpop.permute.xlu0 %268
        %v270 = vlaneseq
        %v271 = vshrl.u32 %v270, 7
        %v272 = vsub.s32 5, %v271
        %v273 = vrot.slane %v177, %v272
        %275 = vbcast.lane.b32.xlu0 %v273, 256
        %v276 = vpop.permute.xlu0 %275
        %v277 = vlaneseq
        %v278 = vshrl.u32 %v277, 7
        %v279 = vsub.s32 6, %v278
        %v280 = vrot.slane %v177, %v279
        %282 = vbcast.lane.b32.xlu0 %v280, 256
        %v283 = vpop.permute.xlu0 %282
        %v284 = vlaneseq
        %v285 = vshrl.u32 %v284, 7
        %v286 = vsub.s32 7, %v285
        %v287 = vrot.slane %v177, %v286
        %289 = vbcast.lane.b32.xlu0 %v287, 256
        %v290 = vpop.permute.xlu0 %289
        %v291 = vmul.f32 %v185, %v178
        %v292 = vmul.f32 %v192, %v178
        %v293 = vmul.f32 %v199, %v178
        %v294 = vmul.f32 %v206, %v178
        %v295 = vmul.f32 %v213, %v178
        %v296 = vmul.f32 %v220, %v178
        %v297 = vmul.f32 %v227, %v178
        %v298 = vmul.f32 %v234, %v178
        %v299 = vmul.f32 %v241, %v178
        %v300 = vmul.f32 %v248, %v178
        %v301 = vmul.f32 %v255, %v178
        %v302 = vmul.f32 %v262, %v178
        %v303 = vmul.f32 %v269, %v178
        %v304 = vmul.f32 %v276, %v178
        %v305 = vmul.f32 %v283, %v178
        %v306 = vmul.f32 %v290, %v178
        %307 = vst [vmem:[%s164] sm:$0xff] %v291
        %308 = vst [vmem:[%s164 + $0x8] sm:$0xff] %v292
        %309 = vst [vmem:[%s164 + $0x10] sm:$0xff] %v293
        %310 = vst [vmem:[%s164 + $0x18] sm:$0xff] %v294
        %311 = vst [vmem:[%s164 + $0x20] sm:$0xff] %v295
        %312 = vst [vmem:[%s164 + $0x28] sm:$0xff] %v296
        %313 = vst [vmem:[%s164 + $0x30] sm:$0xff] %v297
        %314 = vst [vmem:[%s164 + $0x38] sm:$0xff] %v298
        %315 = vst [vmem:[%s164 + $0x40] sm:$0xff] %v299
        %316 = vst [vmem:[%s164 + $0x48] sm:$0xff] %v300
        %317 = vst [vmem:[%s164 + $0x50] sm:$0xff] %v301
        %318 = vst [vmem:[%s164 + $0x58] sm:$0xff] %v302
        %319 = vst [vmem:[%s164 + $0x60] sm:$0xff] %v303
        %320 = vst [vmem:[%s164 + $0x68] sm:$0xff] %v304
        %321 = vst [vmem:[%s164 + $0x70] sm:$0xff] %v305
        %322 = vst [vmem:[%s164 + $0x78] sm:$0xff] %v306
        %s323 = sand.u32 %s90, 1
        %s324 = scalar_lea.sflag [#allocation3], %s323
        %s325 = sand.u32 %s90, 1
        %s326 = smul.addr %s325, 128
        %s327 = scalar_lea.vmem [#allocation2], %s326
        // Predicated region
        $region29: #{tpu_custom_call.1} parent=27 // pred_check
          %p328 = pneg %p100
        $region30: #{tpu_custom_call.1} parent=27 // pred_check_branch
          %330 = sbr.rel (%p328) target = $region32
        $region31: #{tpu_custom_call.1} parent=27 // pred_region
          %s331 = smul.u32 16, %s21
          %s333 = ssub.s32 2048, 2048
          %334 = vsyncadd %s324, %s333
          %s335 = smul.addr %s331, 2
          %s336 = sadd.s32 %s20, %s335
          %s337 = smul.addr %s336, 128
          %s338 = scalar_lea.hbm %s2, %s337
          %s339 = sshll.u32 %s327, 4
          %s340 = int_to_ptr.vmem [resolvable:$true] %s339
          %345 = dma.vmem_to_hbm [thread:$0]  %s340, 2048, %s338, %s324, 128, 256, 8
        $region32: #{tpu_custom_call.1} parent=27 // pred_fallthru
          _
      $region28: #{tpu_custom_call.1} parent=5 // pred_fallthru
        _
      %p346 = scmp.le.s32.totalorder 2, %s11
      // Predicated region
      $region33: #{tpu_custom_call.1} parent=5 // pred_check
        %p347 = pneg %p346
      $region34: #{tpu_custom_call.1} parent=5 // pred_check_branch
        %349 = sbr.rel (%p347) target = $region36
      $region35: #{tpu_custom_call.1} parent=5 // pred_region
        %s350 = ssub.s32 %s11, 2
        // Predicated region
        $region37: #{tpu_custom_call.1} parent=35 // pred_check
          %p351 = pneg %p106
        $region38: #{tpu_custom_call.1} parent=35 // pred_check_branch
          %353 = sbr.rel (%p351) target = $region40
        $region39: #{tpu_custom_call.1} parent=35 // pred_region
          %s354 = sand.u32 %s91, 1
          %s355 = scalar_lea.sflag [#allocation3], %s354
          %s356 = sand.u32 %s91, 1
          %s357 = smul.addr %s356, 128
          %s358 = scalar_lea.vmem [#allocation2], %s357
          %359 = dma.done %s355, 2048
        $region40: #{tpu_custom_call.1} parent=35 // pred_fallthru
          _
      $region36: #{tpu_custom_call.1} parent=5 // pred_fallthru
        _
    $region6: #{tpu_custom_call.1} parent=1 // loop_footer
      %s15 = sadd.s32 1, %s11
    $region7: #{tpu_custom_call.1} parent=1 // loop_footer_branch
      %10 = sbr.rel target = $region3
    $region8: #{tpu_custom_call.1} parent=1 // loop_exit
      _
    %360 = vsyncpa [#allocation3], 1
    %s361 = scalar_lea.sflag [#allocation3], 1
    %362 = vsyncpa %s361, 1

</llo_original>
